<compile_context>
chip_gen: v7x
topology: tpu7x:2x2x1
jax: 0.10.0
libtpu: 0.0.40
codegen_flags: <defaults>
</compile_context>

<pallas_src>
import functools

import jax
import jax.numpy as jnp
from jax.experimental import pallas as pl
from jax.experimental.pallas import tpu as pltpu

LN_EPS = 1e-5
LANE = 128
SUBLANE = 8


def _round_up(n: int, m: int) -> int:
    return ((n + m - 1) // m) * m


def _pick_batch_tile(B: int) -> int:
    """Batch tile: large enough to amortize per-step overhead, >=2 grid steps
    whenever the batch allows it (v7x has 2 TensorCores)."""
    if B >= 2048:
        return 512
    if B >= 512:
        return 256
    if B >= 256:
        return 128
    if B >= 2 * SUBLANE:
        return _round_up((B + 1) // 2, SUBLANE)   # split into ~2 tiles
    return _round_up(B, SUBLANE)


def _vmem_budget_bytes(TB, in_p, hid_p, d_p, param_itemsize, x_itemsize) -> int:
    # Resident params (single-buffered): w1, w2 dominate; (1, dim) vectors pad to 8 sublanes.
    weights = (in_p * hid_p + hid_p * d_p) * param_itemsize
    vectors = SUBLANE * (hid_p + 3 * d_p) * param_itemsize
    # Double-buffered x / out tiles.
    tiles = 2 * TB * (in_p + d_p) * x_itemsize
    # f32 intermediates (h and y) live in vregs/VMEM scratch.
    scratch = TB * (hid_p + d_p) * 4
    budget = int(1.25 * (weights + vectors + tiles + scratch))
    return max(16 * 1024 * 1024, min(budget, 64 * 1024 * 1024))


def global_encoder_kernel(x_ref, w1_ref, b1_ref, w2_ref, b2_ref,
                          gamma_ref, beta_ref, o_ref, *,
                          d_model: int, approximate_gelu: bool):
    # ---- Linear 1: (TB, in_p) @ (in_p, hid_p), native-dtype MXU feed, f32 accumulate.
    h = jnp.dot(x_ref[...], w1_ref[...], preferred_element_type=jnp.float32)
    h = h + b1_ref[...].astype(jnp.float32)

    # ---- GELU.
    if approximate_gelu:
        # tanh form -> transcendental goes to the EUP slot (cheap on all gens).
        h = jax.nn.gelu(h, approximate=True)
    else:
        # Exact erf form matches torch.nn.GELU() default. NOTE: this is the VALU
        # hot spot (erf lowers to a long VPU polynomial over the (TB, hid_p) tile).
        h = 0.5 * h * (1.0 + jax.lax.erf(h * jnp.float32(0.7071067811865476)))

    # ---- Dropout: eval mode -> identity (no-op).

    # ---- Linear 2: (TB, hid_p) @ (hid_p, d_p), f32 accumulate.
    h = h.astype(w2_ref.dtype)
    y = jnp.dot(h, w2_ref[...], preferred_element_type=jnp.float32)
    y = y + b2_ref[...].astype(jnp.float32)

    # ---- LayerNorm over the real d_model features.
    # Padded columns of y are exactly zero (w2/b2 zero-padded), so plain sums
    # over the padded width are exact; no iota/mask needed. The two reductions
    # are independent and overlap on the XLU.
    inv_d = jnp.float32(1.0 / d_model)          # compile-time constant, no divide
    s1 = jnp.sum(y, axis=-1, keepdims=True)
    s2 = jnp.sum(y * y, axis=-1, keepdims=True)
    mean = s1 * inv_d
    var = jnp.maximum(s2 * inv_d - mean * mean, 0.0)
    y_norm = (y - mean) * jax.lax.rsqrt(var + jnp.float32(LN_EPS))

    # Padded gamma/beta columns are zero -> padded output columns stay zero
    # (and are sliced off in the wrapper anyway).
    out = y_norm * gamma_ref[...].astype(jnp.float32) \
        + beta_ref[...].astype(jnp.float32)
    o_ref[...] = out.astype(o_ref.dtype)


def pad_params(w1, b1, w2, b2, gamma, beta, param_dtype=None):
    """Pad (and optionally cast) parameters ONCE, outside the per-call path.
    Returns (padded_params, (input_dim, hidden, d_model)).
    For v6e/v7x, pass param_dtype=jnp.bfloat16 (MXU peak is bf16 there)."""
    input_dim, hidden = w1.shape
    d_model = w2.shape[1]
    in_p = _round_up(input_dim, LANE)
    hid_p = _round_up(hidden, LANE)
    d_p = _round_up(d_model, LANE)

    if param_dtype is not None:
        w1, w2 = w1.astype(param_dtype), w2.astype(param_dtype)

    w1p = jnp.pad(w1, ((0, in_p - input_dim), (0, hid_p - hidden)))
    b1p = jnp.pad(b1, ((0, 0), (0, hid_p - hidden)))
    w2p = jnp.pad(w2, ((0, hid_p - hidden), (0, d_p - d_model)))
    b2p = jnp.pad(b2, ((0, 0), (0, d_p - d_model)))
    gammap = jnp.pad(gamma, ((0, 0), (0, d_p - d_model)))
    betap = jnp.pad(beta, ((0, 0), (0, d_p - d_model)))
    return (w1p, b1p, w2p, b2p, gammap, betap), (input_dim, hidden, d_model)


def global_encoder_padded(x, w1p, b1p, w2p, b2p, gammap, betap, *,
                          input_dim: int, d_model: int,
                          approximate_gelu: bool = False):
    """x: (B, input_dim), unpadded. Params already padded by pad_params()."""
    B = x.shape[0]
    in_p, hid_p = w1p.shape
    d_p = w2p.shape[1]

    TB = _pick_batch_tile(B)
    B_pad = _round_up(B, TB)

    # Only x is padded on the per-call path.
    xp = jnp.pad(x, ((0, B_pad - B), (0, in_p - input_dim)))

    grid = (B_pad // TB,)
    kernel = functools.partial(global_encoder_kernel, d_model=d_model,
                               approximate_gelu=approximate_gelu)

    # Resident operands: constant index_map + single buffer (no double-buffering).
    def resident(a):
        return pl.BlockSpec(a.shape, lambda i: (0,) * a.ndim,
                            pipeline_mode=pl.Buffered(1))

    vmem_bytes = _vmem_budget_bytes(TB, in_p, hid_p, d_p,
                                    jnp.dtype(w1p.dtype).itemsize,
                                    jnp.dtype(x.dtype).itemsize)

    out = pl.pallas_call(
        kernel,
        out_shape=jax.ShapeDtypeStruct((B_pad, d_p), x.dtype),
        grid=grid,
        in_specs=[
            pl.BlockSpec((TB, in_p), lambda i: (i, 0)),   # x: pipelined over batch
            resident(w1p),
            resident(b1p),
            resident(w2p),
            resident(b2p),
            resident(gammap),
            resident(betap),
        ],
        out_specs=pl.BlockSpec((TB, d_p), lambda i: (i, 0)),
        compiler_params=pltpu.CompilerParams(
            dimension_semantics=("parallel",),            # batch shards across TCs (v7x)
            vmem_limit_bytes=vmem_bytes),
    )(xp, w1p, b1p, w2p, b2p, gammap, betap)

    return out[:B, :d_model]


def init_params(key, input_dim, d_model, dtype=jnp.float32):
    """Deterministic synthetic parameters (shapes match nn.Linear / nn.LayerNorm)."""
    hidden = 2 * d_model
    k1, k2, k3, k4 = jax.random.split(key, 4)
    # Store Linear weights as (in, out) == PyTorch weight.T
    w1 = (jax.random.normal(k1, (input_dim, hidden), jnp.float32) /
          jnp.sqrt(jnp.float32(input_dim))).astype(dtype)
    b1 = (0.01 * jax.random.normal(k2, (1, hidden), jnp.float32)).astype(dtype)
    w2 = (jax.random.normal(k3, (hidden, d_model), jnp.float32) /
          jnp.sqrt(jnp.float32(hidden))).astype(dtype)
    b2 = (0.01 * jax.random.normal(k4, (1, d_model), jnp.float32)).astype(dtype)
    gamma = jnp.ones((1, d_model), dtype)
    beta = jnp.zeros((1, d_model), dtype)
    return w1, b1, w2, b2, gamma, beta


def reference(x, w1, b1, w2, b2, gamma, beta):
    """Pure-JAX reference (matches the PyTorch module in eval mode)."""
    h = x @ w1 + b1
    h = 0.5 * h * (1.0 + jax.lax.erf(h / jnp.sqrt(2.0)))
    y = h @ w2 + b2
    mean = jnp.mean(y, axis=-1, keepdims=True)
    var = jnp.mean((y - mean) ** 2, axis=-1, keepdims=True)
    return (y - mean) / jnp.sqrt(var + LN_EPS) * gamma + beta


if __name__ == "__main__":
    batch, input_dim, d_model = 2, 16, 32

    key = jax.random.PRNGKey(0)
    kx, kp = jax.random.split(key)
    x = jax.random.normal(kx, (batch, input_dim), jnp.float32)
    params = init_params(kp, input_dim, d_model)

    # Pad params once (outside the per-call path); only x is padded per call.
    padded, (in_dim, hidden, d_mod) = pad_params(*params)
    fwd = jax.jit(functools.partial(global_encoder_padded,
                                    input_dim=in_dim, d_model=d_mod,
                                    approximate_gelu=False))

    out = fwd(x, *padded)
    jax.block_until_ready(out)

    ref = reference(x, *params)
    assert out.shape == (batch, d_model), out.shape
    assert jnp.allclose(out, ref, atol=1e-4, rtol=1e-4), \
        float(jnp.max(jnp.abs(out - ref)))

    print("KERNEL_OK")
</pallas_src>

<mosaic_0001>
module attributes {stable_mosaic.version = 11 : i64} {
  func.func @global_encoder_kernel(%arg0: i32, %arg1: memref<8x128xf32, #tpu.memory_space<vmem>>, %arg2: memref<128x128xf32, #tpu.memory_space<vmem>>, %arg3: memref<1x128xf32, #tpu.memory_space<vmem>>, %arg4: memref<128x128xf32, #tpu.memory_space<vmem>>, %arg5: memref<1x128xf32, #tpu.memory_space<vmem>>, %arg6: memref<1x128xf32, #tpu.memory_space<vmem>>, %arg7: memref<1x128xf32, #tpu.memory_space<vmem>>, %arg8: memref<8x128xf32, #tpu.memory_space<vmem>>) attributes {dimension_semantics = [#tpu.dimension_semantics<parallel>], iteration_bounds = array<i64: 1>, scalar_prefetch = 0 : i64, scratch_operands = 0 : i64, tpu.core_type = #tpu.core_type<tc>, window_params = [{transform_indices = @transform_0, window_bounds = array<i64: 8, 128>}, {pipeline_mode = #tpu.pipeline_mode<synchronous>, transform_indices = @transform_1, window_bounds = array<i64: 128, 128>}, {pipeline_mode = #tpu.pipeline_mode<synchronous>, transform_indices = @transform_2, window_bounds = array<i64: 1, 128>}, {pipeline_mode = #tpu.pipeline_mode<synchronous>, transform_indices = @transform_3, window_bounds = array<i64: 128, 128>}, {pipeline_mode = #tpu.pipeline_mode<synchronous>, transform_indices = @transform_4, window_bounds = array<i64: 1, 128>}, {pipeline_mode = #tpu.pipeline_mode<synchronous>, transform_indices = @transform_5, window_bounds = array<i64: 1, 128>}, {pipeline_mode = #tpu.pipeline_mode<synchronous>, transform_indices = @transform_6, window_bounds = array<i64: 1, 128>}, {transform_indices = @transform_7, window_bounds = array<i64: 8, 128>}]} {
    %c0 = arith.constant 0 : index
    %c0_0 = arith.constant 0 : index
    %0 = vector.load %arg1[%c0, %c0_0] : memref<8x128xf32, #tpu.memory_space<vmem>>, vector<8x128xf32>
    %c0_1 = arith.constant 0 : index
    %c0_2 = arith.constant 0 : index
    %1 = vector.load %arg2[%c0_1, %c0_2] : memref<128x128xf32, #tpu.memory_space<vmem>>, vector<128x128xf32>
    %cst = arith.constant dense<0.000000e+00> : vector<8x128xf32>
    %2 = tpu.matmul %0, %1, %cst {dimension_numbers = #tpu.dot_dimension_numbers<[1], [0], [0], [1], [0, 0, 1, 1], [], []>} : vector<8x128xf32>, vector<128x128xf32>, vector<8x128xf32> -> vector<8x128xf32>
    %c0_3 = arith.constant 0 : index
    %c0_4 = arith.constant 0 : index
    %3 = vector.load %arg3[%c0_3, %c0_4] : memref<1x128xf32, #tpu.memory_space<vmem>>, vector<1x128xf32>
    %4 = vector.broadcast %3 : vector<1x128xf32> to vector<8x128xf32>
    %5 = arith.addf %2, %4 : vector<8x128xf32>
    %cst_5 = arith.constant 5.000000e-01 : f32
    %6 = vector.broadcast %cst_5 : f32 to vector<8x128xf32>
    %7 = arith.mulf %6, %5 : vector<8x128xf32>
    %cst_6 = arith.constant 0.707106769 : f32
    %8 = vector.broadcast %cst_6 : f32 to vector<8x128xf32>
    %9 = arith.mulf %5, %8 : vector<8x128xf32>
    %10 = math.erf %9 : vector<8x128xf32>
    %cst_7 = arith.constant 1.000000e+00 : f32
    %11 = vector.broadcast %cst_7 : f32 to vector<8x128xf32>
    %12 = arith.addf %11, %10 : vector<8x128xf32>
    %13 = arith.mulf %7, %12 : vector<8x128xf32>
    %c0_8 = arith.constant 0 : index
    %c0_9 = arith.constant 0 : index
    %14 = vector.load %arg4[%c0_8, %c0_9] : memref<128x128xf32, #tpu.memory_space<vmem>>, vector<128x128xf32>
    %cst_10 = arith.constant dense<0.000000e+00> : vector<8x128xf32>
    %15 = tpu.matmul %13, %14, %cst_10 {dimension_numbers = #tpu.dot_dimension_numbers<[1], [0], [0], [1], [0, 0, 1, 1], [], []>} : vector<8x128xf32>, vector<128x128xf32>, vector<8x128xf32> -> vector<8x128xf32>
    %c0_11 = arith.constant 0 : index
    %c0_12 = arith.constant 0 : index
    %16 = vector.load %arg5[%c0_11, %c0_12] : memref<1x128xf32, #tpu.memory_space<vmem>>, vector<1x128xf32>
    %17 = vector.broadcast %16 : vector<1x128xf32> to vector<8x128xf32>
    %18 = arith.addf %15, %17 : vector<8x128xf32>
    %cst_13 = arith.constant dense<0.000000e+00> : vector<8xf32>
    %19 = vector.multi_reduction <add>, %18, %cst_13 [1] : vector<8x128xf32> to vector<8xf32>
    %20 = vector.shape_cast %19 : vector<8xf32> to vector<8x1xf32>
    %21 = arith.mulf %18, %18 : vector<8x128xf32>
    %cst_14 = arith.constant dense<0.000000e+00> : vector<8xf32>
    %22 = vector.multi_reduction <add>, %21, %cst_14 [1] : vector<8x128xf32> to vector<8xf32>
    %23 = vector.shape_cast %22 : vector<8xf32> to vector<8x1xf32>
    %cst_15 = arith.constant 3.125000e-02 : f32
    %24 = vector.broadcast %cst_15 : f32 to vector<8x1xf32>
    %25 = arith.mulf %20, %24 : vector<8x1xf32>
    %cst_16 = arith.constant 3.125000e-02 : f32
    %26 = vector.broadcast %cst_16 : f32 to vector<8x1xf32>
    %27 = arith.mulf %23, %26 : vector<8x1xf32>
    %28 = arith.mulf %25, %25 : vector<8x1xf32>
    %29 = arith.subf %27, %28 : vector<8x1xf32>
    %cst_17 = arith.constant 0.000000e+00 : f32
    %30 = vector.broadcast %cst_17 : f32 to vector<8x1xf32>
    %31 = arith.maximumf %29, %30 : vector<8x1xf32>
    %32 = vector.broadcast %25 : vector<8x1xf32> to vector<8x128xf32>
    %33 = arith.subf %18, %32 : vector<8x128xf32>
    %cst_18 = arith.constant 9.99999974E-6 : f32
    %34 = vector.broadcast %cst_18 : f32 to vector<8x1xf32>
    %35 = arith.addf %31, %34 : vector<8x1xf32>
    %36 = math.rsqrt %35 : vector<8x1xf32>
    %37 = vector.broadcast %36 : vector<8x1xf32> to vector<8x128xf32>
    %38 = arith.mulf %33, %37 : vector<8x128xf32>
    %c0_19 = arith.constant 0 : index
    %c0_20 = arith.constant 0 : index
    %39 = vector.load %arg6[%c0_19, %c0_20] : memref<1x128xf32, #tpu.memory_space<vmem>>, vector<1x128xf32>
    %40 = vector.broadcast %39 : vector<1x128xf32> to vector<8x128xf32>
    %41 = arith.mulf %38, %40 : vector<8x128xf32>
    %c0_21 = arith.constant 0 : index
    %c0_22 = arith.constant 0 : index
    %42 = vector.load %arg7[%c0_21, %c0_22] : memref<1x128xf32, #tpu.memory_space<vmem>>, vector<1x128xf32>
    %43 = vector.broadcast %42 : vector<1x128xf32> to vector<8x128xf32>
    %44 = arith.addf %41, %43 : vector<8x128xf32>
    %c0_23 = arith.constant 0 : index
    %c0_24 = arith.constant 0 : index
    %45 = vector.load %arg8[%c0_23, %c0_24] : memref<8x128xf32, #tpu.memory_space<vmem>>, vector<8x128xf32>
    tpu.vector_store %arg8[%c0_23, %c0_24], %44 {strides = array<i32>} : memref<8x128xf32, #tpu.memory_space<vmem>>, vector<8x128xf32>,
    return
  }
  func.func @transform_0(%arg0: i32) -> (i32, i32) {
    %c0_i32 = arith.constant 0 : i32
    %c0_i32_0 = arith.constant 0 : i32
    return %arg0, %c0_i32 : i32, i32
  }
  func.func @transform_1(%arg0: i32) -> (i32, i32) {
    %c0_i32 = arith.constant 0 : i32
    %c0_i32_0 = arith.constant 0 : i32
    %c0_i32_1 = arith.constant 0 : i32
    return %c0_i32, %c0_i32_0 : i32, i32
  }
  func.func @transform_2(%arg0: i32) -> (i32, i32) {
    %c0_i32 = arith.constant 0 : i32
    %c0_i32_0 = arith.constant 0 : i32
    %c0_i32_1 = arith.constant 0 : i32
    return %c0_i32, %c0_i32_0 : i32, i32
  }
  func.func @transform_3(%arg0: i32) -> (i32, i32) {
    %c0_i32 = arith.constant 0 : i32
    %c0_i32_0 = arith.constant 0 : i32
    %c0_i32_1 = arith.constant 0 : i32
    return %c0_i32, %c0_i32_0 : i32, i32
  }
  func.func @transform_4(%arg0: i32) -> (i32, i32) {
    %c0_i32 = arith.constant 0 : i32
    %c0_i32_0 = arith.constant 0 : i32
    %c0_i32_1 = arith.constant 0 : i32
    return %c0_i32, %c0_i32_0 : i32, i32
  }
  func.func @transform_5(%arg0: i32) -> (i32, i32) {
    %c0_i32 = arith.constant 0 : i32
    %c0_i32_0 = arith.constant 0 : i32
    %c0_i32_1 = arith.constant 0 : i32
    return %c0_i32, %c0_i32_0 : i32, i32
  }
  func.func @transform_6(%arg0: i32) -> (i32, i32) {
    %c0_i32 = arith.constant 0 : i32
    %c0_i32_0 = arith.constant 0 : i32
    %c0_i32_1 = arith.constant 0 : i32
    return %c0_i32, %c0_i32_0 : i32, i32
  }
  func.func @transform_7(%arg0: i32) -> (i32, i32) {
    %c0_i32 = arith.constant 0 : i32
    %c0_i32_0 = arith.constant 0 : i32
    return %arg0, %c0_i32 : i32, i32
  }
}

</mosaic_0001>

<llo_original>
// kernel: global_encoder_padded.1
$region0: #{global_encoder_padded.1}
  #allocation0 [shape = 'u32[]', space=smem, size = 0x4, offset = 0x4, fixed_abs, tag = 'smem constant byte address 0x4 - core index']
  #allocation1 [shape = 'u32[144,128]{1,0:T(1,128)}', space=vmem, size = 0x12000, scoped, tag = 'internal scratch']
  %s0 = inlined_call_operand.vmem [shape: f32[8,128], index: 0, kind: input, shape index: {}]
  %s1 = inlined_call_operand.hbm [shape: f32[128,128], index: 1, kind: input, shape index: {}]
  %s2 = inlined_call_operand.vmem [shape: f32[1,128], index: 2, kind: input, shape index: {}]
  %s3 = inlined_call_operand.hbm [shape: f32[128,128], index: 3, kind: input, shape index: {}]
  %s4 = inlined_call_operand.vmem [shape: f32[1,128], index: 4, kind: input, shape index: {}]
  %s5 = inlined_call_operand.vmem [shape: f32[1,128], index: 5, kind: input, shape index: {}]
  %s6 = inlined_call_operand.vmem [shape: f32[1,128], index: 6, kind: input, shape index: {}]
  %s7 = inlined_call_operand.vmem [shape: f32[8,128], index: 7, kind: output, shape index: {}]
  %s8 = sld [smem:[#allocation0]]
  $region46: #{global_encoder_padded.1} parent=0
    _
  %s10 = ssub.s32 1, %s8
  %s11 = scalar_select 0, %s10, %s8
  $region1: #{global_encoder_padded.1} parent=0
    #allocation2 [shape = 'u8[65536]{0}', space=vmem, size = 0x10000, scoped, tag = 'input window, operand 1, single buffered']
    #allocation3 [shape = 's32[1]{0}', space=sflag, size = 0x4, scoped, tag = 'scoped memory for global_encoder_padded.1']
    #allocation4 [shape = 'u8[65536]{0}', space=vmem, size = 0x10000, scoped, tag = 'input window, operand 3, single buffered']
    #allocation5 [shape = 's32[1]{0}', space=sflag, size = 0x4, scoped, tag = 'scoped memory for global_encoder_padded.1']
    %12 = vsyncpa [#allocation3], 0
    %13 = vsyncpa [#allocation5], 0
    // Predicated region
    $region2: #{global_encoder_padded.1} parent=1 // pred_check
      _
    $region3: #{global_encoder_padded.1} parent=1 // pred_check_branch
      %15 = sbr.rel (0) target = $region5
    $region4: #{global_encoder_padded.1} parent=1 // pred_region
      _
    $region5: #{global_encoder_padded.1} parent=1 // pred_fallthru
      _
    // Predicated region
    $region6: #{global_encoder_padded.1} parent=1 // pred_check
      _
    $region7: #{global_encoder_padded.1} parent=1 // pred_check_branch
      %17 = sbr.rel (0) target = $region9
    $region8: #{global_encoder_padded.1} parent=1 // pred_region
      %s19 = ssub.s32 2048, 2048
      %20 = vsyncadd [#allocation3], %s19
      %s21 = sshll.u32 [#allocation2], 4
      %s22 = int_to_ptr.vmem [resolvable:$true] %s21
      %27 = dma.hbm_to_vmem [thread:$0]  %s1, 2048, %s22, [#allocation3], 128, 128, 8
    $region9: #{global_encoder_padded.1} parent=1 // pred_fallthru
      _
    // Predicated region
    $region10: #{global_encoder_padded.1} parent=1 // pred_check
      _
    $region11: #{global_encoder_padded.1} parent=1 // pred_check_branch
      %29 = sbr.rel (0) target = $region13
    $region12: #{global_encoder_padded.1} parent=1 // pred_region
      _
    $region13: #{global_encoder_padded.1} parent=1 // pred_fallthru
      _
    // Predicated region
    $region14: #{global_encoder_padded.1} parent=1 // pred_check
      _
    $region15: #{global_encoder_padded.1} parent=1 // pred_check_branch
      %31 = sbr.rel (0) target = $region17
    $region16: #{global_encoder_padded.1} parent=1 // pred_region
      %s33 = ssub.s32 2048, 2048
      %34 = vsyncadd [#allocation5], %s33
      %s35 = sshll.u32 [#allocation4], 4
      %s36 = int_to_ptr.vmem [resolvable:$true] %s35
      %41 = dma.hbm_to_vmem [thread:$0]  %s3, 2048, %s36, [#allocation5], 128, 128, 8
    $region17: #{global_encoder_padded.1} parent=1 // pred_fallthru
      _
    // Predicated region
    $region18: #{global_encoder_padded.1} parent=1 // pred_check
      _
    $region19: #{global_encoder_padded.1} parent=1 // pred_check_branch
      %43 = sbr.rel (0) target = $region21
    $region20: #{global_encoder_padded.1} parent=1 // pred_region
      _
    $region21: #{global_encoder_padded.1} parent=1 // pred_fallthru
      _
    // Predicated region
    $region22: #{global_encoder_padded.1} parent=1 // pred_check
      _
    $region23: #{global_encoder_padded.1} parent=1 // pred_check_branch
      %45 = sbr.rel (0) target = $region25
    $region24: #{global_encoder_padded.1} parent=1 // pred_region
      _
    $region25: #{global_encoder_padded.1} parent=1 // pred_fallthru
      _
    // Predicated region
    $region26: #{global_encoder_padded.1} parent=1 // pred_check
      _
    $region27: #{global_encoder_padded.1} parent=1 // pred_check_branch
      %47 = sbr.rel (0) target = $region29
    $region28: #{global_encoder_padded.1} parent=1 // pred_region
      _
    $region29: #{global_encoder_padded.1} parent=1 // pred_fallthru
      _
    // Predicated region
    $region30: #{global_encoder_padded.1} parent=1 // pred_check
      _
    $region31: #{global_encoder_padded.1} parent=1 // pred_check_branch
      %49 = sbr.rel (0) target = $region33
    $region32: #{global_encoder_padded.1} parent=1 // pred_region
      %50 = dma.done [#allocation3], 2048
    $region33: #{global_encoder_padded.1} parent=1 // pred_fallthru
      _
    // Predicated region
    $region34: #{global_encoder_padded.1} parent=1 // pred_check
      _
    $region35: #{global_encoder_padded.1} parent=1 // pred_check_branch
      %52 = sbr.rel (0) target = $region37
    $region36: #{global_encoder_padded.1} parent=1 // pred_region
      %53 = dma.done [#allocation5], 2048
    $region37: #{global_encoder_padded.1} parent=1 // pred_fallthru
      _
    %v54 = vld [vmem:[%s0] sm:$0xff]
    %v55 = vld [vmem:[#allocation2] sm:$0xff]
    %v56 = vld [vmem:[#allocation2 + $0x8] sm:$0xff]
    %v57 = vld [vmem:[#allocation2 + $0x10] sm:$0xff]
    %v58 = vld [vmem:[#allocation2 + $0x18] sm:$0xff]
    %v59 = vld [vmem:[#allocation2 + $0x20] sm:$0xff]
    %v60 = vld [vmem:[#allocation2 + $0x28] sm:$0xff]
    %v61 = vld [vmem:[#allocation2 + $0x30] sm:$0xff]
    %v62 = vld [vmem:[#allocation2 + $0x38] sm:$0xff]
    %v63 = vld [vmem:[#allocation2 + $0x40] sm:$0xff]
    %v64 = vld [vmem:[#allocation2 + $0x48] sm:$0xff]
    %v65 = vld [vmem:[#allocation2 + $0x50] sm:$0xff]
    %v66 = vld [vmem:[#allocation2 + $0x58] sm:$0xff]
    %v67 = vld [vmem:[#allocation2 + $0x60] sm:$0xff]
    %v68 = vld [vmem:[#allocation2 + $0x68] sm:$0xff]
    %v69 = vld [vmem:[#allocation2 + $0x70] sm:$0xff]
    %v70 = vld [vmem:[#allocation2 + $0x78] sm:$0xff]
    %v71 = vld [vmem:[%s2] sm:$0x1]
    %v73 = vlaneseq
    %v74 = vshrl.u32 %v73, 7
    %v75 = vsub.s32 0, %v74
    %v76 = vrot.slane %v71, %v75
    %78 = vmatprep.subr.mxu0 0.0
    %79 = vmatpush1.msra.mxu0 %v55
    %80 = vmatprep.subr.mxu0 0.0
    %81 = vmatpush1.msra.mxu0 %v56
    %82 = vmatprep.subr.mxu0 0.0
    %83 = vmatpush1.msra.mxu0 %v57
    %84 = vmatprep.subr.mxu0 0.0
    %85 = vmatpush1.msra.mxu0 %v58
    %86 = vmatprep.subr.mxu0 0.0
    %87 = vmatpush1.msra.mxu0 %v59
    %88 = vmatprep.subr.mxu0 0.0
    %89 = vmatpush1.msra.mxu0 %v60
    %90 = vmatprep.subr.mxu0 0.0
    %91 = vmatpush1.msra.mxu0 %v61
    %92 = vmatprep.subr.mxu0 0.0
    %93 = vmatpush1.msra.mxu0 %v62
    %94 = vmatprep.subr.mxu0 0.0
    %95 = vmatpush1.msra.mxu0 %v63
    %96 = vmatprep.subr.mxu0 0.0
    %97 = vmatpush1.msra.mxu0 %v64
    %98 = vmatprep.subr.mxu0 0.0
    %99 = vmatpush1.msra.mxu0 %v65
    %100 = vmatprep.subr.mxu0 0.0
    %101 = vmatpush1.msra.mxu0 %v66
    %102 = vmatprep.subr.mxu0 0.0
    %103 = vmatpush1.msra.mxu0 %v67
    %104 = vmatprep.subr.mxu0 0.0
    %105 = vmatpush1.msra.mxu0 %v68
    %106 = vmatprep.subr.mxu0 0.0
    %107 = vmatpush1.msra.mxu0 %v69
    %108 = vmatprep.subr.mxu0 0.0
    %109 = vmatpush1.msra.mxu0 %v70
    %110 = vmatprep.subr.mxu0 0.0
    %111 = vmatpush1.msra.mxu0 0.0
    %112 = vmatprep.subr.mxu0 0.0
    %113 = vmatpush1.msra.mxu0 0.0
    %114 = vmatprep.subr.mxu0 0.0
    %115 = vmatpush1.msra.mxu0 0.0
    %116 = vmatprep.subr.mxu0 0.0
    %117 = vmatpush1.msra.mxu0 0.0
    %118 = vmatprep.subr.mxu0 0.0
    %119 = vmatpush1.msra.mxu0 0.0
    %120 = vmatprep.subr.mxu0 0.0
    %121 = vmatpush1.msra.mxu0 0.0
    %122 = vmatprep.subr.mxu0 0.0
    %123 = vmatpush1.msra.mxu0 0.0
    %124 = vmatprep.subr.mxu0 0.0
    %125 = vmatpush1.msra.mxu0 0.0
    %126 = vmatprep.subr.mxu0 0.0
    %127 = vmatpush1.msra.mxu0 0.0
    %128 = vmatprep.subr.mxu0 0.0
    %129 = vmatpush1.msra.mxu0 0.0
    %130 = vmatprep.subr.mxu0 0.0
    %131 = vmatpush1.msra.mxu0 0.0
    %132 = vmatprep.subr.mxu0 0.0
    %133 = vmatpush1.msra.mxu0 0.0
    %134 = vmatprep.subr.mxu0 0.0
    %135 = vmatpush1.msra.mxu0 0.0
    %136 = vmatprep.subr.mxu0 0.0
    %137 = vmatpush1.msra.mxu0 0.0
    %138 = vmatprep.subr.mxu0 0.0
    %139 = vmatpush1.msra.mxu0 0.0
    %140 = vmatprep.subr.mxu0 0.0
    %141 = vmatpush1.msra.mxu0 0.0
    %142 = vmatprep.mubr.f32.mxu0 0.0
    %143 = vmatmul.mubr.f32.gmra.mrb[0].mxu0 %v54
    %v144 = vpop.f32.mrb[0].mxu0
    %v145 = vadd.f32 %v76, %v144
    %v146 = vpop.f32.mrb[0].mxu0
    %147 = vdwg.mxu0
    %v148 = vmul.f32 %v145, 0.5
    %v149 = vmul.f32 %v145, 0.70710677
    %v150 = verf.f32.pop %v149
    %v151 = vadd.f32 %v150, 1.0
    %v152 = vmul.f32 %v148, %v151
    %v153 = vld [vmem:[#allocation4] sm:$0xff]
    %v154 = vld [vmem:[#allocation4 + $0x8] sm:$0xff]
    %v155 = vld [vmem:[#allocation4 + $0x10] sm:$0xff]
    %v156 = vld [vmem:[#allocation4 + $0x18] sm:$0xff]
    %v157 = vld [vmem:[#allocation4 + $0x20] sm:$0xff]
    %v158 = vld [vmem:[#allocation4 + $0x28] sm:$0xff]
    %v159 = vld [vmem:[#allocation4 + $0x30] sm:$0xff]
    %v160 = vld [vmem:[#allocation4 + $0x38] sm:$0xff]
    %v161 = vld [vmem:[#allocation4 + $0x40] sm:$0xff]
    %v162 = vld [vmem:[#allocation4 + $0x48] sm:$0xff]
    %v163 = vld [vmem:[#allocation4 + $0x50] sm:$0xff]
    %v164 = vld [vmem:[#allocation4 + $0x58] sm:$0xff]
    %v165 = vld [vmem:[#allocation4 + $0x60] sm:$0xff]
    %v166 = vld [vmem:[#allocation4 + $0x68] sm:$0xff]
    %v167 = vld [vmem:[#allocation4 + $0x70] sm:$0xff]
    %v168 = vld [vmem:[#allocation4 + $0x78] sm:$0xff]
    %v169 = vld [vmem:[%s4] sm:$0x1]
    %v171 = vlaneseq
    %v172 = vshrl.u32 %v171, 7
    %v173 = vsub.s32 0, %v172
    %v174 = vrot.slane %v169, %v173
    %176 = vmatprep.subr.mxu0 0.0
    %177 = vmatpush1.msra.mxu0 %v153
    %178 = vmatprep.subr.mxu0 0.0
    %179 = vmatpush1.msra.mxu0 %v154
    %180 = vmatprep.subr.mxu0 0.0
    %181 = vmatpush1.msra.mxu0 %v155
    %182 = vmatprep.subr.mxu0 0.0
    %183 = vmatpush1.msra.mxu0 %v156
    %184 = vmatprep.subr.mxu0 0.0
    %185 = vmatpush1.msra.mxu0 %v157
    %186 = vmatprep.subr.mxu0 0.0
    %187 = vmatpush1.msra.mxu0 %v158
    %188 = vmatprep.subr.mxu0 0.0
    %189 = vmatpush1.msra.mxu0 %v159
    %190 = vmatprep.subr.mxu0 0.0
    %191 = vmatpush1.msra.mxu0 %v160
    %192 = vmatprep.subr.mxu0 0.0
    %193 = vmatpush1.msra.mxu0 %v161
    %194 = vmatprep.subr.mxu0 0.0
    %195 = vmatpush1.msra.mxu0 %v162
    %196 = vmatprep.subr.mxu0 0.0
    %197 = vmatpush1.msra.mxu0 %v163
    %198 = vmatprep.subr.mxu0 0.0
    %199 = vmatpush1.msra.mxu0 %v164
    %200 = vmatprep.subr.mxu0 0.0
    %201 = vmatpush1.msra.mxu0 %v165
    %202 = vmatprep.subr.mxu0 0.0
    %203 = vmatpush1.msra.mxu0 %v166
    %204 = vmatprep.subr.mxu0 0.0
    %205 = vmatpush1.msra.mxu0 %v167
    %206 = vmatprep.subr.mxu0 0.0
    %207 = vmatpush1.msra.mxu0 %v168
    %208 = vmatprep.subr.mxu0 0.0
    %209 = vmatpush1.msra.mxu0 0.0
    %210 = vmatprep.subr.mxu0 0.0
    %211 = vmatpush1.msra.mxu0 0.0
    %212 = vmatprep.subr.mxu0 0.0
    %213 = vmatpush1.msra.mxu0 0.0
    %214 = vmatprep.subr.mxu0 0.0
    %215 = vmatpush1.msra.mxu0 0.0
    %216 = vmatprep.subr.mxu0 0.0
    %217 = vmatpush1.msra.mxu0 0.0
    %218 = vmatprep.subr.mxu0 0.0
    %219 = vmatpush1.msra.mxu0 0.0
    %220 = vmatprep.subr.mxu0 0.0
    %221 = vmatpush1.msra.mxu0 0.0
    %222 = vmatprep.subr.mxu0 0.0
    %223 = vmatpush1.msra.mxu0 0.0
    %224 = vmatprep.subr.mxu0 0.0
    %225 = vmatpush1.msra.mxu0 0.0
    %226 = vmatprep.subr.mxu0 0.0
    %227 = vmatpush1.msra.mxu0 0.0
    %228 = vmatprep.subr.mxu0 0.0
    %229 = vmatpush1.msra.mxu0 0.0
    %230 = vmatprep.subr.mxu0 0.0
    %231 = vmatpush1.msra.mxu0 0.0
    %232 = vmatprep.subr.mxu0 0.0
    %233 = vmatpush1.msra.mxu0 0.0
    %234 = vmatprep.subr.mxu0 0.0
    %235 = vmatpush1.msra.mxu0 0.0
    %236 = vmatprep.subr.mxu0 0.0
    %237 = vmatpush1.msra.mxu0 0.0
    %238 = vmatprep.subr.mxu0 0.0
    %239 = vmatpush1.msra.mxu0 0.0
    %240 = vmatprep.mubr.f32.mxu0 0.0
    %241 = vmatmul.mubr.f32.gmra.mrb[0].mxu0 %v152
    %v242 = vpop.f32.mrb[0].mxu0
    %v243 = vadd.f32 %v174, %v242
    %v244 = vpop.f32.mrb[0].mxu0
    %245 = vdwg.mxu0
    %246 = vadd.xlane.f32.xlu0 %v243
    %v247 = vpop.xlane.xlu0 %246
    %v248 = vmul.f32 %v243, %v243
    %249 = vadd.xlane.f32.xlu0 %v248
    %v250 = vpop.xlane.xlu0 %249
    %v251 = vmul.f32 %v247, 0.03125
    %v252 = vmul.f32 %v250, 0.03125
    %v253 = vmul.f32 %v251, %v251
    %v254 = vsub.f32 %v252, %v253
    %v255 = vmax.f32 %v254, 0.0
    %v256 = vsub.f32 %v243, %v251
    %v257 = vadd.f32 %v255, 1e-05
    %v258 = vrsqrt.pop %v257
    %v259 = vmul.f32 %v256, %v258
    %v260 = vld [vmem:[%s5] sm:$0x1]
    %v262 = vlaneseq
    %v263 = vshrl.u32 %v262, 7
    %v264 = vsub.s32 0, %v263
    %v265 = vrot.slane %v260, %v264
    %v267 = vmul.f32 %v259, %v265
    %v268 = vld [vmem:[%s6] sm:$0x1]
    %v270 = vlaneseq
    %v271 = vshrl.u32 %v270, 7
    %v272 = vsub.s32 0, %v271
    %v273 = vrot.slane %v268, %v272
    %v275 = vadd.f32 %v267, %v273
    %276 = vst [vmem:[%s7] sm:$0xff] %v275
    // Predicated region
    $region38: #{global_encoder_padded.1} parent=1 // pred_check
      _
    $region39: #{global_encoder_padded.1} parent=1 // pred_check_branch
      %278 = sbr.rel (0) target = $region41
    $region40: #{global_encoder_padded.1} parent=1 // pred_region
      _
    $region41: #{global_encoder_padded.1} parent=1 // pred_fallthru
      _
    // Predicated region
    $region42: #{global_encoder_padded.1} parent=1 // pred_check
      _
    $region43: #{global_encoder_padded.1} parent=1 // pred_check_branch
      %280 = sbr.rel (0) target = $region45
    $region44: #{global_encoder_padded.1} parent=1 // pred_region
      _
    $region45: #{global_encoder_padded.1} parent=1 // pred_fallthru
      _
    %281 = vsyncpa [#allocation3], 1
    %282 = vsyncpa [#allocation5], 1

</llo_original>
